<compile_context>
chip_gen: v7x
topology: tpu7x:2x2x1
jax: 0.10.0
libtpu: 0.0.40
codegen_flags: <defaults>
</compile_context>

<pallas_src>
import math

import jax
import jax.numpy as jnp
import numpy as np
from jax.experimental import pallas as pl
from jax.experimental.pallas import tpu as pltpu

_MiB = 1024 * 1024

# Single-buffer invariant weight blocks when supported; auto-fallback otherwise.
_SINGLE_BUFFER_WEIGHTS = True


# ---------------------------------------------------------------------------
# helpers
# ---------------------------------------------------------------------------

def _round_up(x, m):
    return ((x + m - 1) // m) * m


def _const_spec(shape, single_buffer):
    """BlockSpec for a grid-invariant (VMEM-resident) operand."""
    idx = lambda i: (0,) * len(shape)
    if single_buffer:
        # Never re-fetched -> no need for double buffering.
        return pl.BlockSpec(shape, idx, pipeline_mode=pl.Buffered(1))
    return pl.BlockSpec(shape, idx)


def _run_with_fallback(call_fn):
    """Try single-buffered invariant weights; fall back if unsupported."""
    global _SINGLE_BUFFER_WEIGHTS
    if _SINGLE_BUFFER_WEIGHTS:
        try:
            return call_fn(True)
        except Exception:
            _SINGLE_BUFFER_WEIGHTS = False
    return call_fn(False)


def _batch_tiling(B, batch_tile):
    # Multiple of 16 sublanes (dense bf16 packing); 8 only for tiny batches.
    tb = min(batch_tile, _round_up(B, 8 if B < 16 else 16))
    # v7x: guarantee >=2 grid steps for mid-size batches so the "parallel"
    # batch axis can shard over both TensorCores (no effect on v5e/v6e).
    if B >= 32 and pl.cdiv(B, tb) < 2:
        tb = _round_up(pl.cdiv(B, 2), 16)
    Bp = _round_up(B, tb)
    return tb, Bp


def _vmem_limit(resident_bytes, per_step_bytes):
    # Upper bound: everything double-buffered + 25% headroom, clamped to the
    # smallest physical VMEM across generations (64 MiB on v7x).
    est = int(1.25 * (2 * resident_bytes + 2 * per_step_bytes))
    return max(32 * _MiB, min(est, 64 * _MiB))


# ---------------------------------------------------------------------------
# One-time parameter preparation (hoisted out of the forward pass)
# ---------------------------------------------------------------------------

def prepare_linear_params(w):
    """w: [out, in] (torch layout) -> [in, out] bf16, done once at init."""
    return jnp.asarray(w).T.astype(jnp.bfloat16)


def prepare_mlp_params(w1, b1, w2, b2):
    """fc1/fc2 torch-layout params -> pre-transposed bf16 weights, f32 biases."""
    return (jnp.asarray(w1).T.astype(jnp.bfloat16),            # [in, hid]
            jnp.asarray(b1).reshape(1, -1).astype(jnp.float32),  # [1, hid]
            jnp.asarray(w2).T.astype(jnp.bfloat16),            # [hid, out]
            jnp.asarray(b2).reshape(1, -1).astype(jnp.float32))  # [1, out]


# ---------------------------------------------------------------------------
# Kernels
# ---------------------------------------------------------------------------

def _linear_kernel(x_ref, wt_ref, o_ref):
    # x: [tb, K] (f32 from HBM, cast in-kernel), wt: [K, N] bf16 (pre-transposed).
    x = x_ref[...].astype(wt_ref.dtype)
    o_ref[...] = jnp.dot(
        x, wt_ref[...], preferred_element_type=jnp.float32
    ).astype(o_ref.dtype)


def _mlp_kernel(x_ref, w1t_ref, b1_ref, w2t_ref, b2_ref, o_ref):
    # h = relu(x @ W1t + b1); y = h @ W2t + b2.  Epilogue math in f32.
    x = x_ref[...].astype(w1t_ref.dtype)
    h = jnp.dot(x, w1t_ref[...], preferred_element_type=jnp.float32)
    h = jnp.maximum(h + b1_ref[...], 0.0)                     # f32 bias + relu
    y = jnp.dot(h.astype(w2t_ref.dtype), w2t_ref[...],        # bf16 in, f32 acc
                preferred_element_type=jnp.float32)
    o_ref[...] = (y + b2_ref[...]).astype(o_ref.dtype)


# ---------------------------------------------------------------------------
# Wrappers
# ---------------------------------------------------------------------------

def embedding_mapping_linear(x, wt, *, batch_tile=512, out_dtype=jnp.float32):
    """x: [B, in], wt: [in, out] bf16 (from prepare_linear_params) -> [B, out]."""
    B, K = x.shape
    Kw, N = wt.shape
    assert K == Kw
    tb, Bp = _batch_tiling(B, batch_tile)
    x_in = x if Bp == B else jnp.pad(x, ((0, Bp - B), (0, 0)))
    grid = (Bp // tb,)

    out_isz = jnp.dtype(out_dtype).itemsize
    resident = K * N * wt.dtype.itemsize
    per_step = tb * K * x.dtype.itemsize + tb * N * out_isz
    params = pltpu.CompilerParams(
        dimension_semantics=("parallel",),
        vmem_limit_bytes=_vmem_limit(resident, per_step))

    def call(single_buffer):
        return pl.pallas_call(
            _linear_kernel,
            out_shape=jax.ShapeDtypeStruct((Bp, N), out_dtype),
            grid=grid,
            in_specs=[
                pl.BlockSpec((tb, K), lambda i: (i, 0)),
                _const_spec((K, N), single_buffer),      # resident weights
            ],
            out_specs=pl.BlockSpec((tb, N), lambda i: (i, 0)),
            compiler_params=params,
        )(x_in, wt)

    out = _run_with_fallback(call)
    return out if Bp == B else out[:B]


def embedding_mapping_nonlinear(x, w1t, b1, w2t, b2, *, batch_tile=512,
                                out_dtype=jnp.float32):
    """x: [B, in]; w1t: [in, hid] bf16; b1: [1, hid] f32;
    w2t: [hid, out] bf16; b2: [1, out] f32 (from prepare_mlp_params) -> [B, out].
    Keep batch_tile <= 512 on v5e (f32 hidden round-trip vs single vst slot)."""
    B, K = x.shape
    Kw, H = w1t.shape
    Hw, N = w2t.shape
    assert K == Kw and H == Hw
    tb, Bp = _batch_tiling(B, batch_tile)
    x_in = x if Bp == B else jnp.pad(x, ((0, Bp - B), (0, 0)))
    grid = (Bp // tb,)

    out_isz = jnp.dtype(out_dtype).itemsize
    resident = (K * H + H * N) * 2 + (H + N) * 4
    per_step = (tb * K * x.dtype.itemsize + tb * N * out_isz
                + tb * H * 4)                                  # f32 hidden
    params = pltpu.CompilerParams(
        dimension_semantics=("parallel",),
        vmem_limit_bytes=_vmem_limit(resident, per_step))

    def call(single_buffer):
        return pl.pallas_call(
            _mlp_kernel,
            out_shape=jax.ShapeDtypeStruct((Bp, N), out_dtype),
            grid=grid,
            in_specs=[
                pl.BlockSpec((tb, K), lambda i: (i, 0)),
                _const_spec((K, H), single_buffer),      # resident weights
                _const_spec((1, H), single_buffer),      # resident bias
                _const_spec((H, N), single_buffer),
                _const_spec((1, N), single_buffer),
            ],
            out_specs=pl.BlockSpec((tb, N), lambda i: (i, 0)),
            compiler_params=params,
        )(x_in, w1t, b1, w2t, b2)

    out = _run_with_fallback(call)
    return out if Bp == B else out[:B]


# ---------------------------------------------------------------------------
# Deterministic param init (kaiming_uniform with a=sqrt(5), PyTorch-style)
# ---------------------------------------------------------------------------

def kaiming_uniform(key, out_dim, in_dim, a=math.sqrt(5), dtype=jnp.float32):
    gain = math.sqrt(2.0 / (1.0 + a * a))
    bound = gain * math.sqrt(3.0 / in_dim)
    return jax.random.uniform(key, (out_dim, in_dim), dtype, -bound, bound)


# ---------------------------------------------------------------------------
# Main
# ---------------------------------------------------------------------------

if __name__ == "__main__":
    key = jax.random.PRNGKey(0)
    k_x, k_w, k_w1, k_w2 = jax.random.split(key, 4)

    # Small shapes consistent with the module (hidden_dim default 256).
    batch = 8
    input_dim = 32
    output_dim = 64
    hidden_dim = 256

    x = jax.random.normal(k_x, (batch, input_dim), jnp.float32)

    def bf16_round(a):
        return np.asarray(jnp.asarray(a).astype(jnp.bfloat16).astype(jnp.float32))

    # ---- linear path: y = x @ W.T -----------------------------------------
    W = kaiming_uniform(k_w, output_dim, input_dim)
    wt = prepare_linear_params(W)                      # once, at "init"
    y_lin = jax.block_until_ready(embedding_mapping_linear(x, wt))
    # Reference replicates the bf16 operand rounding (f32 accumulation).
    ref_lin = bf16_round(x) @ bf16_round(W).T
    np.testing.assert_allclose(np.asarray(y_lin), ref_lin, rtol=1e-2, atol=1e-2)

    # ---- nonlinear path: fc2(relu(fc1(x))) ---------------------------------
    W1 = kaiming_uniform(k_w1, hidden_dim, input_dim)
    b1 = jnp.zeros((hidden_dim,), jnp.float32)
    W2 = kaiming_uniform(k_w2, output_dim, hidden_dim)
    b2 = jnp.zeros((output_dim,), jnp.float32)
    mlp_params = prepare_mlp_params(W1, b1, W2, b2)    # once, at "init"

    y_mlp = jax.block_until_ready(
        embedding_mapping_nonlinear(x, *mlp_params))

    h_ref = np.maximum(bf16_round(x) @ bf16_round(W1).T + np.asarray(b1), 0.0)
    ref_mlp = bf16_round(h_ref) @ bf16_round(W2).T + np.asarray(b2)
    np.testing.assert_allclose(np.asarray(y_mlp), ref_mlp, rtol=1e-2, atol=1e-2)

    print("KERNEL_OK")
</pallas_src>

<mosaic_0001>
module attributes {stable_mosaic.version = 11 : i64} {
  func.func @_linear_kernel(%arg0: i32, %arg1: memref<8x32xf32, #tpu.memory_space<vmem>>, %arg2: memref<32x64xbf16, #tpu.memory_space<vmem>>, %arg3: memref<8x64xf32, #tpu.memory_space<vmem>>) attributes {dimension_semantics = [#tpu.dimension_semantics<parallel>], iteration_bounds = array<i64: 1>, scalar_prefetch = 0 : i64, scratch_operands = 0 : i64, tpu.core_type = #tpu.core_type<tc>, window_params = [{transform_indices = @transform_0, window_bounds = array<i64: 8, 32>}, {pipeline_mode = #tpu.pipeline_mode<synchronous>, transform_indices = @transform_1, window_bounds = array<i64: 32, 64>}, {transform_indices = @transform_2, window_bounds = array<i64: 8, 64>}]} {
    %c0 = arith.constant 0 : index
    %c0_0 = arith.constant 0 : index
    %0 = vector.load %arg1[%c0, %c0_0] : memref<8x32xf32, #tpu.memory_space<vmem>>, vector<8x32xf32>
    %1 = arith.truncf %0 : vector<8x32xf32> to vector<8x32xbf16>
    %c0_1 = arith.constant 0 : index
    %c0_2 = arith.constant 0 : index
    %2 = vector.load %arg2[%c0_1, %c0_2] : memref<32x64xbf16, #tpu.memory_space<vmem>>, vector<32x64xbf16>
    %cst = arith.constant dense<0.000000e+00> : vector<8x64xf32>
    %3 = tpu.matmul %1, %2, %cst {dimension_numbers = #tpu.dot_dimension_numbers<[1], [0], [0], [1], [0, 0, 1, 1], [], []>} : vector<8x32xbf16>, vector<32x64xbf16>, vector<8x64xf32> -> vector<8x64xf32>
    %c0_3 = arith.constant 0 : index
    %c0_4 = arith.constant 0 : index
    %4 = vector.load %arg3[%c0_3, %c0_4] : memref<8x64xf32, #tpu.memory_space<vmem>>, vector<8x64xf32>
    tpu.vector_store %arg3[%c0_3, %c0_4], %3 {strides = array<i32>} : memref<8x64xf32, #tpu.memory_space<vmem>>, vector<8x64xf32>,
    return
  }
  func.func @transform_0(%arg0: i32) -> (i32, i32) {
    %c0_i32 = arith.constant 0 : i32
    %c0_i32_0 = arith.constant 0 : i32
    return %arg0, %c0_i32 : i32, i32
  }
  func.func @transform_1(%arg0: i32) -> (i32, i32) {
    %c0_i32 = arith.constant 0 : i32
    %c0_i32_0 = arith.constant 0 : i32
    %c0_i32_1 = arith.constant 0 : i32
    return %c0_i32, %c0_i32_0 : i32, i32
  }
  func.func @transform_2(%arg0: i32) -> (i32, i32) {
    %c0_i32 = arith.constant 0 : i32
    %c0_i32_0 = arith.constant 0 : i32
    return %arg0, %c0_i32 : i32, i32
  }
}

module attributes {stable_mosaic.version = 11 : i64} {
  func.func @_linear_kernel(%arg0: i32, %arg1: memref<8x32xf32, #tpu.memory_space<vmem>>, %arg2: memref<32x64xbf16, #tpu.memory_space<vmem>>, %arg3: memref<8x64xf32, #tpu.memory_space<vmem>>) attributes {dimension_semantics = [#tpu.dimension_semantics<parallel>], iteration_bounds = array<i64: 1>, scalar_prefetch = 0 : i64, scratch_operands = 0 : i64, tpu.core_type = #tpu.core_type<tc>, window_params = [{transform_indices = @transform_0, window_bounds = array<i64: 8, 32>}, {pipeline_mode = #tpu.pipeline_mode<synchronous>, transform_indices = @transform_1, window_bounds = array<i64: 32, 64>}, {transform_indices = @transform_2, window_bounds = array<i64: 8, 64>}]} {
    %c0 = arith.constant 0 : index
    %c0_0 = arith.constant 0 : index
    %0 = vector.load %arg1[%c0, %c0_0] : memref<8x32xf32, #tpu.memory_space<vmem>>, vector<8x32xf32>
    %1 = arith.truncf %0 : vector<8x32xf32> to vector<8x32xbf16>
    %c0_1 = arith.constant 0 : index
    %c0_2 = arith.constant 0 : index
    %2 = vector.load %arg2[%c0_1, %c0_2] : memref<32x64xbf16, #tpu.memory_space<vmem>>, vector<32x64xbf16>
    %cst = arith.constant dense<0.000000e+00> : vector<8x64xf32>
    %3 = tpu.matmul %1, %2, %cst {dimension_numbers = #tpu.dot_dimension_numbers<[1], [0], [0], [1], [0, 0, 1, 1], [], []>} : vector<8x32xbf16>, vector<32x64xbf16>, vector<8x64xf32> -> vector<8x64xf32>
    %c0_3 = arith.constant 0 : index
    %c0_4 = arith.constant 0 : index
    %4 = vector.load %arg3[%c0_3, %c0_4] : memref<8x64xf32, #tpu.memory_space<vmem>>, vector<8x64xf32>
    tpu.vector_store %arg3[%c0_3, %c0_4], %3 {strides = array<i32>} : memref<8x64xf32, #tpu.memory_space<vmem>>, vector<8x64xf32>,
    return
  }
  func.func @transform_0(%arg0: i32) -> (i32, i32) {
    %c0_i32 = arith.constant 0 : i32
    %c0_i32_0 = arith.constant 0 : i32
    return %arg0, %c0_i32 : i32, i32
  }
  func.func @transform_1(%arg0: i32) -> (i32, i32) {
    %c0_i32 = arith.constant 0 : i32
    %c0_i32_0 = arith.constant 0 : i32
    %c0_i32_1 = arith.constant 0 : i32
    return %c0_i32, %c0_i32_0 : i32, i32
  }
  func.func @transform_2(%arg0: i32) -> (i32, i32) {
    %c0_i32 = arith.constant 0 : i32
    %c0_i32_0 = arith.constant 0 : i32
    return %arg0, %c0_i32 : i32, i32
  }
}

</mosaic_0001>

<llo_original>
// kernel: tpu_custom_call.1
$region0: #{tpu_custom_call.1}
  #allocation0 [shape = 'u32[]', space=smem, size = 0x4, offset = 0x4, fixed_abs, tag = 'smem constant byte address 0x4 - core index']
  #allocation1 [shape = 'u32[144,128]{1,0:T(1,128)}', space=vmem, size = 0x12000, scoped, tag = 'internal scratch']
  %s0 = inlined_call_operand.hbm [shape: f32[8,32], index: 0, kind: input, shape index: {}]
  %s1 = inlined_call_operand.hbm [shape: bf16[32,64], index: 1, kind: input, shape index: {}]
  %s2 = inlined_call_operand.hbm [shape: f32[8,64], index: 2, kind: output, shape index: {}]
  %s3 = sld [smem:[#allocation0]]
  $region26: #{tpu_custom_call.1} parent=0
    _
  %s5 = ssub.s32 1, %s3
  %s6 = scalar_select 0, %s5, %s3
  $region1: #{tpu_custom_call.1} parent=0
    #allocation2 [shape = 'u8[4096]{0}', space=vmem, size = 0x1000, scoped, tag = 'input window, operand 0, single buffered']
    #allocation3 [shape = 's32[1]{0}', space=sflag, size = 0x4, scoped, tag = 'scoped memory for tpu_custom_call.1']
    #allocation4 [shape = 's32[1]{0}', space=sflag, size = 0x4, scoped, tag = 'scoped memory for tpu_custom_call.1']
    #allocation5 [shape = 'u8[8192]{0}', space=vmem, size = 0x2000, scoped, tag = 'input window, operand 1, single buffered']
    #allocation6 [shape = 's32[1]{0}', space=sflag, size = 0x4, scoped, tag = 'scoped memory for tpu_custom_call.1']
    #allocation7 [shape = 'u8[4096]{0}', space=vmem, size = 0x1000, scoped, tag = 'output window, operand 0, single buffered']
    %7 = vsyncpa [#allocation3], 0
    %8 = vsyncpa [#allocation6], 0
    %9 = vsyncpa [#allocation4], 0
    // Predicated region
    $region2: #{tpu_custom_call.1} parent=1 // pred_check
      _
    $region3: #{tpu_custom_call.1} parent=1 // pred_check_branch
      %11 = sbr.rel (0) target = $region5
    $region4: #{tpu_custom_call.1} parent=1 // pred_region
      %s13 = ssub.s32 128, 128
      %14 = vsyncadd [#allocation3], %s13
      %s16 = sshll.u32 [#allocation2], 4
      %s17 = int_to_ptr.vmem [resolvable:$true] %s16
      %19 = dma.hbm_to_vmem [thread:$0]  %s0, 128, %s17, [#allocation3]
    $region5: #{tpu_custom_call.1} parent=1 // pred_fallthru
      _
    // Predicated region
    $region6: #{tpu_custom_call.1} parent=1 // pred_check
      _
    $region7: #{tpu_custom_call.1} parent=1 // pred_check_branch
      %21 = sbr.rel (0) target = $region9
    $region8: #{tpu_custom_call.1} parent=1 // pred_region
      %s23 = ssub.s32 256, 256
      %24 = vsyncadd [#allocation6], %s23
      %s25 = sshll.u32 [#allocation5], 4
      %s26 = int_to_ptr.vmem [resolvable:$true] %s25
      %31 = dma.hbm_to_vmem [thread:$0]  %s1, 256, %s26, [#allocation6], 64, 64, 4
    $region9: #{tpu_custom_call.1} parent=1 // pred_fallthru
      _
    // Predicated region
    $region10: #{tpu_custom_call.1} parent=1 // pred_check
      _
    $region11: #{tpu_custom_call.1} parent=1 // pred_check_branch
      %33 = sbr.rel (0) target = $region13
    $region12: #{tpu_custom_call.1} parent=1 // pred_region
      %34 = dma.done [#allocation3], 128
    $region13: #{tpu_custom_call.1} parent=1 // pred_fallthru
      _
    // Predicated region
    $region14: #{tpu_custom_call.1} parent=1 // pred_check
      _
    $region15: #{tpu_custom_call.1} parent=1 // pred_check_branch
      %36 = sbr.rel (0) target = $region17
    $region16: #{tpu_custom_call.1} parent=1 // pred_region
      %37 = dma.done [#allocation6], 256
    $region17: #{tpu_custom_call.1} parent=1 // pred_fallthru
      _
    %v39 = vld [vmem:[#allocation2] sm:$0xff]
    %v40 = vpack.c.bf16 %v39, %v39
    %v41 = vld [vmem:[#allocation5] sm:$0xf]
    %v42 = vld [vmem:[#allocation5 + $0x4] sm:$0xf]
    %v43 = vld [vmem:[#allocation5 + $0x8] sm:$0xf]
    %v44 = vld [vmem:[#allocation5 + $0xc] sm:$0xf]
    %v49 = vunpack.c.l.b16 %v41
    %v50 = vunpack.c.l.b16 %v42
    %v51 = vunpack.c.l.b16 %v43
    %v52 = vunpack.c.l.b16 %v44
    %v53 = vpack.c.b16 %v50, %v49
    %v54 = vpack.c.b16 %v52, %v51
    %vm57 = vcmask 261120
    %v59 = vsel %vm57, %v40, 0
    %61 = vmatprep.subr.bf16.mxu0 0
    %62 = vmatpush1.bf16.msra.mxu0 %v53
    %63 = vmatprep.subr.bf16.mxu0 0
    %64 = vmatpush1.bf16.msra.mxu0 %v54
    %65 = vmatprep.subr.bf16.mxu0 0
    %66 = vmatpush1.bf16.msra.mxu0 0
    %67 = vmatprep.subr.bf16.mxu0 0
    %68 = vmatpush1.bf16.msra.mxu0 0
    %69 = vmatprep.subr.bf16.mxu0 0
    %70 = vmatpush1.bf16.msra.mxu0 0
    %71 = vmatprep.subr.bf16.mxu0 0
    %72 = vmatpush1.bf16.msra.mxu0 0
    %73 = vmatprep.subr.bf16.mxu0 0
    %74 = vmatpush1.bf16.msra.mxu0 0
    %75 = vmatprep.subr.bf16.mxu0 0
    %76 = vmatpush1.bf16.msra.mxu0 0
    %77 = vmatprep.subr.bf16.mxu0 0
    %78 = vmatpush1.bf16.msra.mxu0 0
    %79 = vmatprep.subr.bf16.mxu0 0
    %80 = vmatpush1.bf16.msra.mxu0 0
    %81 = vmatprep.subr.bf16.mxu0 0
    %82 = vmatpush1.bf16.msra.mxu0 0
    %83 = vmatprep.subr.bf16.mxu0 0
    %84 = vmatpush1.bf16.msra.mxu0 0
    %85 = vmatprep.subr.bf16.mxu0 0
    %86 = vmatpush1.bf16.msra.mxu0 0
    %87 = vmatprep.subr.bf16.mxu0 0
    %88 = vmatpush1.bf16.msra.mxu0 0
    %89 = vmatprep.subr.bf16.mxu0 0
    %90 = vmatpush1.bf16.msra.mxu0 0
    %91 = vmatprep.subr.bf16.mxu0 0
    %92 = vmatpush1.bf16.msra.mxu0 0
    %93 = vmatprep.mubr.bf16.mxu0 0
    %94 = vmatmul.mubr.bf16.gmra.mrb[0].mxu0 %v59
    %v95 = vpop.f32.mrb[0].mxu0
    %v96 = vadd.f32 0.0, %v95
    %v97 = vpop.f32.mrb[0].mxu0
    %v98 = vpop.f32.mrb[0].mxu0
    %v99 = vpop.f32.mrb[0].mxu0
    %100 = vdwg.mxu0
    %vm101 = vcmask 523264
    %102 = vst.msk [vmem:[#allocation7] sm:$0xff] %vm101, %v96
    // Predicated region
    $region18: #{tpu_custom_call.1} parent=1 // pred_check
      _
    $region19: #{tpu_custom_call.1} parent=1 // pred_check_branch
      %104 = sbr.rel (0) target = $region21
    $region20: #{tpu_custom_call.1} parent=1 // pred_region
      %s106 = ssub.s32 128, 128
      %107 = vsyncadd [#allocation4], %s106
      %s109 = sshll.u32 [#allocation7], 4
      %s110 = int_to_ptr.vmem [resolvable:$true] %s109
      %112 = dma.vmem_to_hbm [thread:$0]  %s110, 128, %s2, [#allocation4]
    $region21: #{tpu_custom_call.1} parent=1 // pred_fallthru
      _
    // Predicated region
    $region22: #{tpu_custom_call.1} parent=1 // pred_check
      _
    $region23: #{tpu_custom_call.1} parent=1 // pred_check_branch
      %114 = sbr.rel (0) target = $region25
    $region24: #{tpu_custom_call.1} parent=1 // pred_region
      %115 = dma.done [#allocation4], 128
    $region25: #{tpu_custom_call.1} parent=1 // pred_fallthru
      _
    %116 = vsyncpa [#allocation3], 1
    %117 = vsyncpa [#allocation6], 1
    %118 = vsyncpa [#allocation4], 1

// kernel: tpu_custom_call.1
$region0: #{tpu_custom_call.1}
  #allocation0 [shape = 'u32[]', space=smem, size = 0x4, offset = 0x4, fixed_abs, tag = 'smem constant byte address 0x4 - core index']
  #allocation1 [shape = 'u32[144,128]{1,0:T(1,128)}', space=vmem, size = 0x12000, scoped, tag = 'internal scratch']
  %s0 = inlined_call_operand.hbm [shape: f32[8,32], index: 0, kind: input, shape index: {}]
  %s1 = inlined_call_operand.hbm [shape: bf16[32,64], index: 1, kind: input, shape index: {}]
  %s2 = inlined_call_operand.hbm [shape: f32[8,64], index: 2, kind: output, shape index: {}]
  %s3 = sld [smem:[#allocation0]]
  $region26: #{tpu_custom_call.1} parent=0
    _
  %s5 = ssub.s32 1, %s3
  %s6 = scalar_select 0, %s5, %s3
  $region1: #{tpu_custom_call.1} parent=0
    #allocation2 [shape = 'u8[4096]{0}', space=vmem, size = 0x1000, scoped, tag = 'input window, operand 0, single buffered']
    #allocation3 [shape = 's32[1]{0}', space=sflag, size = 0x4, scoped, tag = 'scoped memory for tpu_custom_call.1']
    #allocation4 [shape = 's32[1]{0}', space=sflag, size = 0x4, scoped, tag = 'scoped memory for tpu_custom_call.1']
    #allocation5 [shape = 'u8[8192]{0}', space=vmem, size = 0x2000, scoped, tag = 'input window, operand 1, single buffered']
    #allocation6 [shape = 's32[1]{0}', space=sflag, size = 0x4, scoped, tag = 'scoped memory for tpu_custom_call.1']
    #allocation7 [shape = 'u8[4096]{0}', space=vmem, size = 0x1000, scoped, tag = 'output window, operand 0, single buffered']
    %7 = vsyncpa [#allocation3], 0
    %8 = vsyncpa [#allocation6], 0
    %9 = vsyncpa [#allocation4], 0
    // Predicated region
    $region2: #{tpu_custom_call.1} parent=1 // pred_check
      _
    $region3: #{tpu_custom_call.1} parent=1 // pred_check_branch
      %11 = sbr.rel (0) target = $region5
    $region4: #{tpu_custom_call.1} parent=1 // pred_region
      %s13 = ssub.s32 128, 128
      %14 = vsyncadd [#allocation3], %s13
      %s16 = sshll.u32 [#allocation2], 4
      %s17 = int_to_ptr.vmem [resolvable:$true] %s16
      %19 = dma.hbm_to_vmem [thread:$0]  %s0, 128, %s17, [#allocation3]
    $region5: #{tpu_custom_call.1} parent=1 // pred_fallthru
      _
    // Predicated region
    $region6: #{tpu_custom_call.1} parent=1 // pred_check
      _
    $region7: #{tpu_custom_call.1} parent=1 // pred_check_branch
      %21 = sbr.rel (0) target = $region9
    $region8: #{tpu_custom_call.1} parent=1 // pred_region
      %s23 = ssub.s32 256, 256
      %24 = vsyncadd [#allocation6], %s23
      %s25 = sshll.u32 [#allocation5], 4
      %s26 = int_to_ptr.vmem [resolvable:$true] %s25
      %31 = dma.hbm_to_vmem [thread:$0]  %s1, 256, %s26, [#allocation6], 64, 64, 4
    $region9: #{tpu_custom_call.1} parent=1 // pred_fallthru
      _
    // Predicated region
    $region10: #{tpu_custom_call.1} parent=1 // pred_check
      _
    $region11: #{tpu_custom_call.1} parent=1 // pred_check_branch
      %33 = sbr.rel (0) target = $region13
    $region12: #{tpu_custom_call.1} parent=1 // pred_region
      %34 = dma.done [#allocation3], 128
    $region13: #{tpu_custom_call.1} parent=1 // pred_fallthru
      _
    // Predicated region
    $region14: #{tpu_custom_call.1} parent=1 // pred_check
      _
    $region15: #{tpu_custom_call.1} parent=1 // pred_check_branch
      %36 = sbr.rel (0) target = $region17
    $region16: #{tpu_custom_call.1} parent=1 // pred_region
      %37 = dma.done [#allocation6], 256
    $region17: #{tpu_custom_call.1} parent=1 // pred_fallthru
      _
    %v39 = vld [vmem:[#allocation2] sm:$0xff]
    %v40 = vpack.c.bf16 %v39, %v39
    %v41 = vld [vmem:[#allocation5] sm:$0xf]
    %v42 = vld [vmem:[#allocation5 + $0x4] sm:$0xf]
    %v43 = vld [vmem:[#allocation5 + $0x8] sm:$0xf]
    %v44 = vld [vmem:[#allocation5 + $0xc] sm:$0xf]
    %v49 = vunpack.c.l.b16 %v41
    %v50 = vunpack.c.l.b16 %v42
    %v51 = vunpack.c.l.b16 %v43
    %v52 = vunpack.c.l.b16 %v44
    %v53 = vpack.c.b16 %v50, %v49
    %v54 = vpack.c.b16 %v52, %v51
    %vm57 = vcmask 261120
    %v59 = vsel %vm57, %v40, 0
    %61 = vmatprep.subr.bf16.mxu0 0
    %62 = vmatpush1.bf16.msra.mxu0 %v53
    %63 = vmatprep.subr.bf16.mxu0 0
    %64 = vmatpush1.bf16.msra.mxu0 %v54
    %65 = vmatprep.subr.bf16.mxu0 0
    %66 = vmatpush1.bf16.msra.mxu0 0
    %67 = vmatprep.subr.bf16.mxu0 0
    %68 = vmatpush1.bf16.msra.mxu0 0
    %69 = vmatprep.subr.bf16.mxu0 0
    %70 = vmatpush1.bf16.msra.mxu0 0
    %71 = vmatprep.subr.bf16.mxu0 0
    %72 = vmatpush1.bf16.msra.mxu0 0
    %73 = vmatprep.subr.bf16.mxu0 0
    %74 = vmatpush1.bf16.msra.mxu0 0
    %75 = vmatprep.subr.bf16.mxu0 0
    %76 = vmatpush1.bf16.msra.mxu0 0
    %77 = vmatprep.subr.bf16.mxu0 0
    %78 = vmatpush1.bf16.msra.mxu0 0
    %79 = vmatprep.subr.bf16.mxu0 0
    %80 = vmatpush1.bf16.msra.mxu0 0
    %81 = vmatprep.subr.bf16.mxu0 0
    %82 = vmatpush1.bf16.msra.mxu0 0
    %83 = vmatprep.subr.bf16.mxu0 0
    %84 = vmatpush1.bf16.msra.mxu0 0
    %85 = vmatprep.subr.bf16.mxu0 0
    %86 = vmatpush1.bf16.msra.mxu0 0
    %87 = vmatprep.subr.bf16.mxu0 0
    %88 = vmatpush1.bf16.msra.mxu0 0
    %89 = vmatprep.subr.bf16.mxu0 0
    %90 = vmatpush1.bf16.msra.mxu0 0
    %91 = vmatprep.subr.bf16.mxu0 0
    %92 = vmatpush1.bf16.msra.mxu0 0
    %93 = vmatprep.mubr.bf16.mxu0 0
    %94 = vmatmul.mubr.bf16.gmra.mrb[0].mxu0 %v59
    %v95 = vpop.f32.mrb[0].mxu0
    %v96 = vadd.f32 0.0, %v95
    %v97 = vpop.f32.mrb[0].mxu0
    %v98 = vpop.f32.mrb[0].mxu0
    %v99 = vpop.f32.mrb[0].mxu0
    %100 = vdwg.mxu0
    %vm101 = vcmask 523264
    %102 = vst.msk [vmem:[#allocation7] sm:$0xff] %vm101, %v96
    // Predicated region
    $region18: #{tpu_custom_call.1} parent=1 // pred_check
      _
    $region19: #{tpu_custom_call.1} parent=1 // pred_check_branch
      %104 = sbr.rel (0) target = $region21
    $region20: #{tpu_custom_call.1} parent=1 // pred_region
      %s106 = ssub.s32 128, 128
      %107 = vsyncadd [#allocation4], %s106
      %s109 = sshll.u32 [#allocation7], 4
      %s110 = int_to_ptr.vmem [resolvable:$true] %s109
      %112 = dma.vmem_to_hbm [thread:$0]  %s110, 128, %s2, [#allocation4]
    $region21: #{tpu_custom_call.1} parent=1 // pred_fallthru
      _
    // Predicated region
    $region22: #{tpu_custom_call.1} parent=1 // pred_check
      _
    $region23: #{tpu_custom_call.1} parent=1 // pred_check_branch
      %114 = sbr.rel (0) target = $region25
    $region24: #{tpu_custom_call.1} parent=1 // pred_region
      %115 = dma.done [#allocation4], 128
    $region25: #{tpu_custom_call.1} parent=1 // pred_fallthru
      _
    %116 = vsyncpa [#allocation3], 1
    %117 = vsyncpa [#allocation6], 1
    %118 = vsyncpa [#allocation4], 1

</llo_original>
